<compile_context>
chip_gen: v5e
topology: v5e:2x2
jax: 0.10.0
libtpu: 0.0.40
codegen_flags: <defaults>
</compile_context>

<pallas_src>
import jax
import jax.numpy as jnp
from jax.experimental import pallas as pl
from jax.experimental.pallas import tpu as pltpu

LANE = 128                 # lane width (last-dim tiling unit)
BF16_SUBLANE = 16          # bf16 packs 16 rows per vreg
MAX_BATCH_TILE = 1024      # large-batch tile (review: 256 -> 1024)
SINGLE_TILE_MAX = 256      # below this, whole batch in one grid step


def _round_up(n, m):
    return ((n + m - 1) // m) * m


def mlp_kernel(x_ref, w1_ref, ws_ref, bs_ref, o_ref):
    """Fused Linear->ReLU (x4) -> Linear for one batch tile.

    x_ref : (tile, input_dim) bf16  -- feature dim left unpadded (13 real cols)
    w1_ref: (input_dim, 128)  bf16
    ws_ref: (4, 128, 128)     bf16  -- layers 2..5, zero-padded to 128x128
    bs_ref: (5, 1, 128)       f32   -- all biases, zero-padded to 128 lanes
    o_ref : (tile, 128)       bf16  -- padded logits (first 7 lanes real)

    Matmuls run on the MXU in bf16 with f32 accumulation; bias-add / ReLU in
    f32.  Dropout = identity (eval mode).
    """
    h = jnp.dot(x_ref[...], w1_ref[...],
                preferred_element_type=jnp.float32) + bs_ref[0]
    h = jnp.maximum(h, 0.0).astype(jnp.bfloat16)
    for l in range(4):                           # static unrolled layer loop
        acc = jnp.dot(h, ws_ref[l],
                      preferred_element_type=jnp.float32) + bs_ref[l + 1]
        if l < 3:
            h = jnp.maximum(acc, 0.0).astype(jnp.bfloat16)
        else:
            h = acc                              # final logits, f32
    o_ref[...] = h.astype(o_ref.dtype)


def prepare_params(params):
    """Pad / cast / stack the weights ONCE (hoisted out of the forward path).

    params: list of (W (in, out), b (out,)) f32 arrays — transpose of
    PyTorch's (out, in) layout, so the kernel computes y = x @ W + b.
    """
    input_dim = params[0][0].shape[0]
    output_dim = params[-1][0].shape[1]

    w1, _ = params[0]
    assert w1.shape[1] == LANE, "first hidden width must be 128"
    w1p = w1.astype(jnp.bfloat16)                            # (13, 128)

    w_stack = jnp.zeros((len(params) - 1, LANE, LANE), jnp.bfloat16)
    for i, (w, _) in enumerate(params[1:]):
        w_stack = w_stack.at[i, :w.shape[0], :w.shape[1]].set(
            w.astype(jnp.bfloat16))

    b_stack = jnp.zeros((len(params), 1, LANE), jnp.float32)
    for i, (_, b) in enumerate(params):
        b_stack = b_stack.at[i, 0, :b.shape[0]].set(b)

    return w1p, w_stack, b_stack, input_dim, output_dim


def mlp_forward(x, prepared):
    """x: (B, input_dim) f32. prepared: output of prepare_params()."""
    w1p, w_stack, b_stack, input_dim, output_dim = prepared
    B = x.shape[0]
    assert x.shape[1] == input_dim

    # --- batch tiling --------------------------------------------------------
    if B <= SINGLE_TILE_MAX:
        batch_tile = _round_up(B, BF16_SUBLANE)   # whole batch, one grid step
        num_tiles = 1
    else:
        batch_tile = min(MAX_BATCH_TILE, _round_up((B + 1) // 2, BF16_SUBLANE))
        num_tiles = pl.cdiv(B, batch_tile)
        if num_tiles % 2:                         # keep both v7x TCs fed
            num_tiles += 1
    b_pad = batch_tile * num_tiles

    xb = x.astype(jnp.bfloat16)
    if b_pad != B:
        xb = jnp.zeros((b_pad, input_dim), jnp.bfloat16).at[:B].set(xb)

    # --- cost hint ------------------------------------------------------------
    n_layers = 1 + w_stack.shape[0]
    flops = 2 * b_pad * (input_dim * LANE + (n_layers - 1) * LANE * LANE)
    bytes_accessed = (xb.size * 2 + w1p.size * 2 + w_stack.size * 2
                      + b_stack.size * 4 + b_pad * LANE * 2)
    cost = pl.CostEstimate(flops=int(flops), transcendentals=0,
                           bytes_accessed=int(bytes_accessed))

    # --- pallas call -----------------------------------------------------------
    out_padded = pl.pallas_call(
        mlp_kernel,
        out_shape=jax.ShapeDtypeStruct((b_pad, LANE), jnp.bfloat16),
        grid_spec=pl.GridSpec(
            grid=(num_tiles,),
            in_specs=[
                pl.BlockSpec((batch_tile, input_dim), lambda i: (i, 0)),
                # Constant index_maps => weights/biases stay resident in VMEM.
                pl.BlockSpec(w1p.shape, lambda i: (0, 0)),
                pl.BlockSpec(w_stack.shape, lambda i: (0, 0, 0)),
                pl.BlockSpec(b_stack.shape, lambda i: (0, 0, 0)),
            ],
            out_specs=pl.BlockSpec((batch_tile, LANE), lambda i: (i, 0)),
        ),
        compiler_params=pltpu.CompilerParams(
            dimension_semantics=("parallel",),
        ),
        cost_estimate=cost,
    )(xb, w1p, w_stack, b_stack)

    return out_padded[:B, :output_dim].astype(jnp.float32)


def init_linear_params(key, in_dim, out_dim):
    """PyTorch nn.Linear default init: U(-1/sqrt(in), 1/sqrt(in))."""
    kw, kb = jax.random.split(key)
    bound = 1.0 / jnp.sqrt(jnp.float32(in_dim))
    w = jax.random.uniform(kw, (in_dim, out_dim), jnp.float32, -bound, bound)
    b = jax.random.uniform(kb, (out_dim,), jnp.float32, -bound, bound)
    return w, b


def make_params(key, input_dim, output_dim):
    dims = [input_dim, 128, 64, 32, 16, output_dim]
    keys = jax.random.split(key, len(dims) - 1)
    return [init_linear_params(k, dims[i], dims[i + 1])
            for i, k in enumerate(keys)]


def mlp_reference(x, params):
    """Pure-JAX reference matching the kernel's bf16-matmul / f32-accumulate numerics."""
    def q(a):
        return a.astype(jnp.bfloat16).astype(jnp.float32)

    h = x
    n = len(params)
    for i, (w, b) in enumerate(params):
        h = jnp.dot(q(h), q(w), precision=jax.lax.Precision.HIGHEST) + b[None, :]
        if i < n - 1:
            h = jnp.maximum(h, 0.0)
    return h


if __name__ == "__main__":
    key = jax.random.PRNGKey(0)
    k_x, k_p = jax.random.split(key)

    # Dacon 대출(loan) dataset: ~13 tabular features, 7 loan-grade classes.
    batch, input_dim, output_dim = 16, 13, 7

    x = jax.random.normal(k_x, (batch, input_dim), jnp.float32)
    params = make_params(k_p, input_dim, output_dim)
    prepared = prepare_params(params)          # padding/cast hoisted, done once

    out = mlp_forward(x, prepared)
    out = jax.block_until_ready(out)

    ref = mlp_reference(x, params)
    assert out.shape == (batch, output_dim)
    # Kernel emits bf16 logits (lane-dense writeback), so allow bf16-level tol.
    assert jnp.allclose(out, ref, atol=2e-2, rtol=2e-2), "mismatch vs reference"

    print("KERNEL_OK")
</pallas_src>

<mosaic_0001>
module attributes {stable_mosaic.version = 11 : i64} {
  func.func @mlp_kernel(%arg0: i32, %arg1: memref<16x13xbf16, #tpu.memory_space<vmem>>, %arg2: memref<13x128xbf16, #tpu.memory_space<vmem>>, %arg3: memref<4x128x128xbf16, #tpu.memory_space<vmem>>, %arg4: memref<5x1x128xf32, #tpu.memory_space<vmem>>, %arg5: memref<16x128xbf16, #tpu.memory_space<vmem>>) attributes {dimension_semantics = [#tpu.dimension_semantics<parallel>], iteration_bounds = array<i64: 1>, scalar_prefetch = 0 : i64, scratch_operands = 0 : i64, tpu.core_type = #tpu.core_type<tc>, window_params = [{transform_indices = @transform_0, window_bounds = array<i64: 16, 13>}, {pipeline_mode = #tpu.pipeline_mode<synchronous>, transform_indices = @transform_1, window_bounds = array<i64: 13, 128>}, {pipeline_mode = #tpu.pipeline_mode<synchronous>, transform_indices = @transform_2, window_bounds = array<i64: 4, 128, 128>}, {pipeline_mode = #tpu.pipeline_mode<synchronous>, transform_indices = @transform_3, window_bounds = array<i64: 5, 1, 128>}, {transform_indices = @transform_4, window_bounds = array<i64: 16, 128>}]} {
    %c0 = arith.constant 0 : index
    %c0_0 = arith.constant 0 : index
    %0 = vector.load %arg1[%c0, %c0_0] : memref<16x13xbf16, #tpu.memory_space<vmem>>, vector<16x13xbf16>
    %c0_1 = arith.constant 0 : index
    %c0_2 = arith.constant 0 : index
    %1 = vector.load %arg2[%c0_1, %c0_2] : memref<13x128xbf16, #tpu.memory_space<vmem>>, vector<13x128xbf16>
    %cst = arith.constant dense<0.000000e+00> : vector<16x128xf32>
    %2 = tpu.matmul %0, %1, %cst {dimension_numbers = #tpu.dot_dimension_numbers<[1], [0], [0], [1], [0, 0, 1, 1], [], []>} : vector<16x13xbf16>, vector<13x128xbf16>, vector<16x128xf32> -> vector<16x128xf32>
    %c0_3 = arith.constant 0 : index
    %c0_4 = arith.constant 0 : index
    %c0_5 = arith.constant 0 : index
    %3 = vector.load %arg4[%c0_3, %c0_4, %c0_5] : memref<5x1x128xf32, #tpu.memory_space<vmem>>, vector<1x1x128xf32>
    %4 = vector.shape_cast %3 : vector<1x1x128xf32> to vector<1x128xf32>
    %5 = vector.broadcast %4 : vector<1x128xf32> to vector<16x128xf32>
    %6 = arith.addf %2, %5 : vector<16x128xf32>
    %cst_6 = arith.constant 0.000000e+00 : f32
    %7 = vector.broadcast %cst_6 : f32 to vector<16x128xf32>
    %8 = arith.maximumf %6, %7 : vector<16x128xf32>
    %9 = arith.truncf %8 : vector<16x128xf32> to vector<16x128xbf16>
    %c0_7 = arith.constant 0 : index
    %c0_8 = arith.constant 0 : index
    %c0_9 = arith.constant 0 : index
    %10 = vector.load %arg3[%c0_7, %c0_8, %c0_9] : memref<4x128x128xbf16, #tpu.memory_space<vmem>>, vector<1x128x128xbf16>
    %11 = vector.shape_cast %10 : vector<1x128x128xbf16> to vector<128x128xbf16>
    %cst_10 = arith.constant dense<0.000000e+00> : vector<16x128xf32>
    %12 = tpu.matmul %9, %11, %cst_10 {dimension_numbers = #tpu.dot_dimension_numbers<[1], [0], [0], [1], [0, 0, 1, 1], [], []>} : vector<16x128xbf16>, vector<128x128xbf16>, vector<16x128xf32> -> vector<16x128xf32>
    %c1 = arith.constant 1 : index
    %c0_11 = arith.constant 0 : index
    %c0_12 = arith.constant 0 : index
    %13 = vector.load %arg4[%c1, %c0_11, %c0_12] : memref<5x1x128xf32, #tpu.memory_space<vmem>>, vector<1x1x128xf32>
    %14 = vector.shape_cast %13 : vector<1x1x128xf32> to vector<1x128xf32>
    %15 = vector.broadcast %14 : vector<1x128xf32> to vector<16x128xf32>
    %16 = arith.addf %12, %15 : vector<16x128xf32>
    %cst_13 = arith.constant 0.000000e+00 : f32
    %17 = vector.broadcast %cst_13 : f32 to vector<16x128xf32>
    %18 = arith.maximumf %16, %17 : vector<16x128xf32>
    %19 = arith.truncf %18 : vector<16x128xf32> to vector<16x128xbf16>
    %c1_14 = arith.constant 1 : index
    %c0_15 = arith.constant 0 : index
    %c0_16 = arith.constant 0 : index
    %20 = vector.load %arg3[%c1_14, %c0_15, %c0_16] : memref<4x128x128xbf16, #tpu.memory_space<vmem>>, vector<1x128x128xbf16>
    %21 = vector.shape_cast %20 : vector<1x128x128xbf16> to vector<128x128xbf16>
    %cst_17 = arith.constant dense<0.000000e+00> : vector<16x128xf32>
    %22 = tpu.matmul %19, %21, %cst_17 {dimension_numbers = #tpu.dot_dimension_numbers<[1], [0], [0], [1], [0, 0, 1, 1], [], []>} : vector<16x128xbf16>, vector<128x128xbf16>, vector<16x128xf32> -> vector<16x128xf32>
    %c2 = arith.constant 2 : index
    %c0_18 = arith.constant 0 : index
    %c0_19 = arith.constant 0 : index
    %23 = vector.load %arg4[%c2, %c0_18, %c0_19] : memref<5x1x128xf32, #tpu.memory_space<vmem>>, vector<1x1x128xf32>
    %24 = vector.shape_cast %23 : vector<1x1x128xf32> to vector<1x128xf32>
    %25 = vector.broadcast %24 : vector<1x128xf32> to vector<16x128xf32>
    %26 = arith.addf %22, %25 : vector<16x128xf32>
    %cst_20 = arith.constant 0.000000e+00 : f32
    %27 = vector.broadcast %cst_20 : f32 to vector<16x128xf32>
    %28 = arith.maximumf %26, %27 : vector<16x128xf32>
    %29 = arith.truncf %28 : vector<16x128xf32> to vector<16x128xbf16>
    %c2_21 = arith.constant 2 : index
    %c0_22 = arith.constant 0 : index
    %c0_23 = arith.constant 0 : index
    %30 = vector.load %arg3[%c2_21, %c0_22, %c0_23] : memref<4x128x128xbf16, #tpu.memory_space<vmem>>, vector<1x128x128xbf16>
    %31 = vector.shape_cast %30 : vector<1x128x128xbf16> to vector<128x128xbf16>
    %cst_24 = arith.constant dense<0.000000e+00> : vector<16x128xf32>
    %32 = tpu.matmul %29, %31, %cst_24 {dimension_numbers = #tpu.dot_dimension_numbers<[1], [0], [0], [1], [0, 0, 1, 1], [], []>} : vector<16x128xbf16>, vector<128x128xbf16>, vector<16x128xf32> -> vector<16x128xf32>
    %c3 = arith.constant 3 : index
    %c0_25 = arith.constant 0 : index
    %c0_26 = arith.constant 0 : index
    %33 = vector.load %arg4[%c3, %c0_25, %c0_26] : memref<5x1x128xf32, #tpu.memory_space<vmem>>, vector<1x1x128xf32>
    %34 = vector.shape_cast %33 : vector<1x1x128xf32> to vector<1x128xf32>
    %35 = vector.broadcast %34 : vector<1x128xf32> to vector<16x128xf32>
    %36 = arith.addf %32, %35 : vector<16x128xf32>
    %cst_27 = arith.constant 0.000000e+00 : f32
    %37 = vector.broadcast %cst_27 : f32 to vector<16x128xf32>
    %38 = arith.maximumf %36, %37 : vector<16x128xf32>
    %39 = arith.truncf %38 : vector<16x128xf32> to vector<16x128xbf16>
    %c3_28 = arith.constant 3 : index
    %c0_29 = arith.constant 0 : index
    %c0_30 = arith.constant 0 : index
    %40 = vector.load %arg3[%c3_28, %c0_29, %c0_30] : memref<4x128x128xbf16, #tpu.memory_space<vmem>>, vector<1x128x128xbf16>
    %41 = vector.shape_cast %40 : vector<1x128x128xbf16> to vector<128x128xbf16>
    %cst_31 = arith.constant dense<0.000000e+00> : vector<16x128xf32>
    %42 = tpu.matmul %39, %41, %cst_31 {dimension_numbers = #tpu.dot_dimension_numbers<[1], [0], [0], [1], [0, 0, 1, 1], [], []>} : vector<16x128xbf16>, vector<128x128xbf16>, vector<16x128xf32> -> vector<16x128xf32>
    %c4 = arith.constant 4 : index
    %c0_32 = arith.constant 0 : index
    %c0_33 = arith.constant 0 : index
    %43 = vector.load %arg4[%c4, %c0_32, %c0_33] : memref<5x1x128xf32, #tpu.memory_space<vmem>>, vector<1x1x128xf32>
    %44 = vector.shape_cast %43 : vector<1x1x128xf32> to vector<1x128xf32>
    %45 = vector.broadcast %44 : vector<1x128xf32> to vector<16x128xf32>
    %46 = arith.addf %42, %45 : vector<16x128xf32>
    %47 = arith.truncf %46 : vector<16x128xf32> to vector<16x128xbf16>
    %c0_34 = arith.constant 0 : index
    %c0_35 = arith.constant 0 : index
    %48 = vector.load %arg5[%c0_34, %c0_35] : memref<16x128xbf16, #tpu.memory_space<vmem>>, vector<16x128xbf16>
    tpu.vector_store %arg5[%c0_34, %c0_35], %47 {strides = array<i32>} : memref<16x128xbf16, #tpu.memory_space<vmem>>, vector<16x128xbf16>,
    return
  }
  func.func @transform_0(%arg0: i32) -> (i32, i32) {
    %c0_i32 = arith.constant 0 : i32
    %c0_i32_0 = arith.constant 0 : i32
    return %arg0, %c0_i32 : i32, i32
  }
  func.func @transform_1(%arg0: i32) -> (i32, i32) {
    %c0_i32 = arith.constant 0 : i32
    %c0_i32_0 = arith.constant 0 : i32
    %c0_i32_1 = arith.constant 0 : i32
    return %c0_i32, %c0_i32_0 : i32, i32
  }
  func.func @transform_2(%arg0: i32) -> (i32, i32, i32) {
    %c0_i32 = arith.constant 0 : i32
    %c0_i32_0 = arith.constant 0 : i32
    %c0_i32_1 = arith.constant 0 : i32
    %c0_i32_2 = arith.constant 0 : i32
    return %c0_i32, %c0_i32_0, %c0_i32_1 : i32, i32, i32
  }
  func.func @transform_3(%arg0: i32) -> (i32, i32, i32) {
    %c0_i32 = arith.constant 0 : i32
    %c0_i32_0 = arith.constant 0 : i32
    %c0_i32_1 = arith.constant 0 : i32
    %c0_i32_2 = arith.constant 0 : i32
    return %c0_i32, %c0_i32_0, %c0_i32_1 : i32, i32, i32
  }
  func.func @transform_4(%arg0: i32) -> (i32, i32) {
    %c0_i32 = arith.constant 0 : i32
    %c0_i32_0 = arith.constant 0 : i32
    return %arg0, %c0_i32 : i32, i32
  }
}

</mosaic_0001>

<llo_original>
// kernel: tpu_custom_call.1
$region0: #{tpu_custom_call.1}
  #allocation0 [shape = 'u32[]', space=smem, size = 0x4, offset = 0x4, fixed_abs, tag = 'smem constant byte address 0x4 - core index']
  #allocation1 [shape = 'u32[72,128]{1,0:T(1,128)}', space=vmem, size = 0x9000, scoped, tag = 'internal scratch']
  %s0 = inlined_call_operand.hbm [shape: bf16[16,13], index: 0, kind: input, shape index: {}]
  %s1 = inlined_call_operand.hbm [shape: bf16[13,128], index: 1, kind: input, shape index: {}]
  %s2 = inlined_call_operand.hbm [shape: bf16[4,128,128], index: 2, kind: input, shape index: {}]
  %s3 = inlined_call_operand.hbm [shape: f32[5,1,128], index: 3, kind: input, shape index: {}]
  %s4 = inlined_call_operand.hbm [shape: bf16[16,128], index: 4, kind: output, shape index: {}]
  %s5 = sld [smem:[#allocation0]]
  $region42: #{tpu_custom_call.1} parent=0
    _
  %s7 = ssub.s32 1, %s5
  %s8 = scalar_select 0, %s7, %s5
  $region1: #{tpu_custom_call.1} parent=0
    #allocation2 [shape = 'u8[4096]{0}', space=vmem, size = 0x1000, scoped, tag = 'input window, operand 0, single buffered']
    #allocation3 [shape = 's32[1]{0}', space=sflag, size = 0x4, scoped, tag = 'scoped memory for tpu_custom_call.1']
    #allocation4 [shape = 's32[1]{0}', space=sflag, size = 0x4, scoped, tag = 'scoped memory for tpu_custom_call.1']
    #allocation5 [shape = 'u8[4096]{0}', space=vmem, size = 0x1000, scoped, tag = 'input window, operand 1, single buffered']
    #allocation6 [shape = 's32[1]{0}', space=sflag, size = 0x4, scoped, tag = 'scoped memory for tpu_custom_call.1']
    #allocation7 [shape = 'u8[131072]{0}', space=vmem, size = 0x20000, scoped, tag = 'input window, operand 2, single buffered']
    #allocation8 [shape = 'u8[2560]{0}', space=vmem, size = 0xc00, scoped, tag = 'input window, operand 3, single buffered']
    #allocation9 [shape = 's32[1]{0}', space=sflag, size = 0x4, scoped, tag = 'scoped memory for tpu_custom_call.1']
    #allocation10 [shape = 'u8[4096]{0}', space=vmem, size = 0x1000, scoped, tag = 'output window, operand 0, single buffered']
    %9 = vsyncpa [#allocation3], 0
    %10 = vsyncpa [#allocation6], 0
    %11 = vsyncpa [#allocation9], 0
    %12 = vsyncpa [#allocation4], 0
    // Predicated region
    $region2: #{tpu_custom_call.1} parent=1 // pred_check
      _
    $region3: #{tpu_custom_call.1} parent=1 // pred_check_branch
      %14 = sbr.rel (0) target = $region5
    $region4: #{tpu_custom_call.1} parent=1 // pred_region
      %16 = vsyncadd [#allocation3], 0
      %s17 = sshll.u32 %s0, 4
      %s18 = int_to_ptr.hbm [resolvable:$true] %s17
      %s19 = sshll.u32 [#allocation2], 4
      %s20 = int_to_ptr.vmem [resolvable:$true] %s19
      %25 = dma.hbm_to_vmem [thread:$0]  %s18, 128, %s20, [#allocation3], 64, 64, 4
    $region5: #{tpu_custom_call.1} parent=1 // pred_fallthru
      _
    // Predicated region
    $region6: #{tpu_custom_call.1} parent=1 // pred_check
      _
    $region7: #{tpu_custom_call.1} parent=1 // pred_check_branch
      %27 = sbr.rel (0) target = $region9
    $region8: #{tpu_custom_call.1} parent=1 // pred_region
      %29 = vsyncadd [#allocation6], 0
      %s30 = sshll.u32 %s1, 4
      %s31 = int_to_ptr.hbm [resolvable:$true] %s30
      %s32 = sshll.u32 [#allocation5], 4
      %s33 = int_to_ptr.vmem [resolvable:$true] %s32
      %38 = dma.hbm_to_vmem [thread:$0]  %s31, 128, %s33, [#allocation6], 64, 64, 4
    $region9: #{tpu_custom_call.1} parent=1 // pred_fallthru
      _
    // Predicated region
    $region10: #{tpu_custom_call.1} parent=1 // pred_check
      _
    $region11: #{tpu_custom_call.1} parent=1 // pred_check_branch
      %40 = sbr.rel (0) target = $region13
    $region12: #{tpu_custom_call.1} parent=1 // pred_region
      %42 = vsyncadd [#allocation6], 0
      %s43 = sshll.u32 %s2, 4
      %s44 = int_to_ptr.hbm [resolvable:$true] %s43
      %s45 = sshll.u32 [#allocation7], 4
      %s46 = int_to_ptr.vmem [resolvable:$true] %s45
      %51 = dma.hbm_to_vmem [thread:$0]  %s44, 4096, %s46, [#allocation6], 64, 64, 4
    $region13: #{tpu_custom_call.1} parent=1 // pred_fallthru
      _
    // Predicated region
    $region14: #{tpu_custom_call.1} parent=1 // pred_check
      _
    $region15: #{tpu_custom_call.1} parent=1 // pred_check_branch
      %53 = sbr.rel (0) target = $region17
    $region16: #{tpu_custom_call.1} parent=1 // pred_region
      %55 = vsyncadd [#allocation9], 0
      %s56 = sshll.u32 %s3, 4
      %s57 = int_to_ptr.hbm [resolvable:$true] %s56
      %s58 = sshll.u32 [#allocation8], 4
      %s59 = int_to_ptr.vmem [resolvable:$true] %s58
      %64 = dma.hbm_to_vmem [thread:$0]  %s57, 80, %s59, [#allocation9], 16, 16, 1
    $region17: #{tpu_custom_call.1} parent=1 // pred_fallthru
      _
    // Predicated region
    $region18: #{tpu_custom_call.1} parent=1 // pred_check
      _
    $region19: #{tpu_custom_call.1} parent=1 // pred_check_branch
      %66 = sbr.rel (0) target = $region21
    $region20: #{tpu_custom_call.1} parent=1 // pred_region
      %68 = dma.done [#allocation3], 128
    $region21: #{tpu_custom_call.1} parent=1 // pred_fallthru
      _
    // Predicated region
    $region22: #{tpu_custom_call.1} parent=1 // pred_check
      _
    $region23: #{tpu_custom_call.1} parent=1 // pred_check_branch
      %70 = sbr.rel (0) target = $region25
    $region24: #{tpu_custom_call.1} parent=1 // pred_region
      %72 = dma.done [#allocation6], 128
    $region25: #{tpu_custom_call.1} parent=1 // pred_fallthru
      _
    // Predicated region
    $region26: #{tpu_custom_call.1} parent=1 // pred_check
      _
    $region27: #{tpu_custom_call.1} parent=1 // pred_check_branch
      %74 = sbr.rel (0) target = $region29
    $region28: #{tpu_custom_call.1} parent=1 // pred_region
      %76 = dma.done [#allocation6], 4096
    $region29: #{tpu_custom_call.1} parent=1 // pred_fallthru
      _
    // Predicated region
    $region30: #{tpu_custom_call.1} parent=1 // pred_check
      _
    $region31: #{tpu_custom_call.1} parent=1 // pred_check_branch
      %78 = sbr.rel (0) target = $region33
    $region32: #{tpu_custom_call.1} parent=1 // pred_region
      %80 = dma.done [#allocation9], 80
    $region33: #{tpu_custom_call.1} parent=1 // pred_fallthru
      _
    %v82 = vld [vmem:[#allocation2] sm:$0xf]
    %v83 = vld [vmem:[#allocation2 + $0x4] sm:$0xf]
    %v84 = vld [vmem:[#allocation5] sm:$0xf]
    %v85 = vld [vmem:[#allocation5 + $0x4] sm:$0x7]
    %v86 = vld [vmem:[#allocation8] sm:$0x1]
    %v88 = vperm.slane %v86, 0
    %v92 = vunpack.c.l.b16 %v82
    %v93 = vunpack.c.l.b16 %v83
    %v94 = vpack.c.b16 %v93, %v92
    %v97 = vunpack.c.l.b16 %v84
    %v98 = vunpack.c.l.b16 %v85
    %v99 = vpack.c.b16 %v98, %v97
    %vm100 = vcmask 105472
    %v102 = vsel %vm100, %v94, 0
    %vm104 = vcmask 1045504
    %vm105 = vcmask 1046528
    %v106 = vsel %vm104, 4294967295, 65535
    %v107 = vsel %vm105, %v106, 0
    %v109 = vand.u32 %v99, %v107
    %111 = vmatpush.bf16.msra.mxu0 0
    %112 = vmatpush.bf16.msra.mxu0 0
    %113 = vmatpush.bf16.msra.mxu0 0
    %114 = vmatpush.bf16.msra.mxu0 0
    %115 = vmatpush.bf16.msra.mxu0 0
    %116 = vmatpush.bf16.msra.mxu0 0
    %117 = vmatpush.bf16.msra.mxu0 0
    %118 = vmatpush.bf16.msra.mxu0 %v109
    %119 = vmatmul.bf16.gmra.mxu0 %v102
    %v120 = vpop.f32.mrf.mxu0
    %v121 = vadd.f32 %v88, %v120
    %v122 = vpop.f32.mrf.mxu0
    %v123 = vadd.f32 %v88, %v122
    %124 = vdwg.mxu0
    %v125 = vmax.f32 %v121, 0.0
    %v126 = vmax.f32 %v123, 0.0
    %v127 = vpack.c.bf16 %v126, %v125
    %v128 = vld [vmem:[#allocation7] sm:$0xf]
    %v129 = vld [vmem:[#allocation7 + $0x4] sm:$0xf]
    %v130 = vld [vmem:[#allocation7 + $0x8] sm:$0xf]
    %v131 = vld [vmem:[#allocation7 + $0xc] sm:$0xf]
    %v132 = vld [vmem:[#allocation7 + $0x10] sm:$0xf]
    %v133 = vld [vmem:[#allocation7 + $0x14] sm:$0xf]
    %v134 = vld [vmem:[#allocation7 + $0x18] sm:$0xf]
    %v135 = vld [vmem:[#allocation7 + $0x1c] sm:$0xf]
    %v136 = vld [vmem:[#allocation7 + $0x20] sm:$0xf]
    %v137 = vld [vmem:[#allocation7 + $0x24] sm:$0xf]
    %v138 = vld [vmem:[#allocation7 + $0x28] sm:$0xf]
    %v139 = vld [vmem:[#allocation7 + $0x2c] sm:$0xf]
    %v140 = vld [vmem:[#allocation7 + $0x30] sm:$0xf]
    %v141 = vld [vmem:[#allocation7 + $0x34] sm:$0xf]
    %v142 = vld [vmem:[#allocation7 + $0x38] sm:$0xf]
    %v143 = vld [vmem:[#allocation7 + $0x3c] sm:$0xf]
    %s144 = scalar_lea.vmem [#allocation8], 1
    %v145 = vld [vmem:[%s144] sm:$0x1]
    %v147 = vperm.slane %v145, 0
    %v165 = vunpack.c.l.b16 %v128
    %v166 = vunpack.c.l.b16 %v129
    %v167 = vunpack.c.l.b16 %v130
    %v168 = vunpack.c.l.b16 %v131
    %v169 = vunpack.c.l.b16 %v132
    %v170 = vunpack.c.l.b16 %v133
    %v171 = vunpack.c.l.b16 %v134
    %v172 = vunpack.c.l.b16 %v135
    %v173 = vunpack.c.l.b16 %v136
    %v174 = vunpack.c.l.b16 %v137
    %v175 = vunpack.c.l.b16 %v138
    %v176 = vunpack.c.l.b16 %v139
    %v177 = vunpack.c.l.b16 %v140
    %v178 = vunpack.c.l.b16 %v141
    %v179 = vunpack.c.l.b16 %v142
    %v180 = vunpack.c.l.b16 %v143
    %v181 = vpack.c.b16 %v166, %v165
    %v182 = vpack.c.b16 %v168, %v167
    %v183 = vpack.c.b16 %v170, %v169
    %v184 = vpack.c.b16 %v172, %v171
    %v185 = vpack.c.b16 %v174, %v173
    %v186 = vpack.c.b16 %v176, %v175
    %v187 = vpack.c.b16 %v178, %v177
    %v188 = vpack.c.b16 %v180, %v179
    %197 = vmatpush.bf16.msra.mxu0 %v188
    %198 = vmatpush.bf16.msra.mxu0 %v187
    %199 = vmatpush.bf16.msra.mxu0 %v186
    %200 = vmatpush.bf16.msra.mxu0 %v185
    %201 = vmatpush.bf16.msra.mxu0 %v184
    %202 = vmatpush.bf16.msra.mxu0 %v183
    %203 = vmatpush.bf16.msra.mxu0 %v182
    %204 = vmatpush.bf16.msra.mxu0 %v181
    %205 = vmatmul.bf16.gmra.mxu0 %v127
    %v206 = vpop.f32.mrf.mxu0
    %v207 = vadd.f32 %v147, %v206
    %v208 = vpop.f32.mrf.mxu0
    %v209 = vadd.f32 %v147, %v208
    %210 = vdwg.mxu0
    %v211 = vmax.f32 %v207, 0.0
    %v212 = vmax.f32 %v209, 0.0
    %v213 = vpack.c.bf16 %v212, %v211
    %s214 = scalar_lea.vmem [#allocation7], 64
    %v215 = vld [vmem:[%s214] sm:$0xf]
    %v216 = vld [vmem:[%s214 + $0x4] sm:$0xf]
    %v217 = vld [vmem:[%s214 + $0x8] sm:$0xf]
    %v218 = vld [vmem:[%s214 + $0xc] sm:$0xf]
    %v219 = vld [vmem:[%s214 + $0x10] sm:$0xf]
    %v220 = vld [vmem:[%s214 + $0x14] sm:$0xf]
    %v221 = vld [vmem:[%s214 + $0x18] sm:$0xf]
    %v222 = vld [vmem:[%s214 + $0x1c] sm:$0xf]
    %v223 = vld [vmem:[%s214 + $0x20] sm:$0xf]
    %v224 = vld [vmem:[%s214 + $0x24] sm:$0xf]
    %v225 = vld [vmem:[%s214 + $0x28] sm:$0xf]
    %v226 = vld [vmem:[%s214 + $0x2c] sm:$0xf]
    %v227 = vld [vmem:[%s214 + $0x30] sm:$0xf]
    %v228 = vld [vmem:[%s214 + $0x34] sm:$0xf]
    %v229 = vld [vmem:[%s214 + $0x38] sm:$0xf]
    %v230 = vld [vmem:[%s214 + $0x3c] sm:$0xf]
    %s231 = scalar_lea.vmem [#allocation8], 2
    %v232 = vld [vmem:[%s231] sm:$0x1]
    %v234 = vperm.slane %v232, 0
    %v252 = vunpack.c.l.b16 %v215
    %v253 = vunpack.c.l.b16 %v216
    %v254 = vunpack.c.l.b16 %v217
    %v255 = vunpack.c.l.b16 %v218
    %v256 = vunpack.c.l.b16 %v219
    %v257 = vunpack.c.l.b16 %v220
    %v258 = vunpack.c.l.b16 %v221
    %v259 = vunpack.c.l.b16 %v222
    %v260 = vunpack.c.l.b16 %v223
    %v261 = vunpack.c.l.b16 %v224
    %v262 = vunpack.c.l.b16 %v225
    %v263 = vunpack.c.l.b16 %v226
    %v264 = vunpack.c.l.b16 %v227
    %v265 = vunpack.c.l.b16 %v228
    %v266 = vunpack.c.l.b16 %v229
    %v267 = vunpack.c.l.b16 %v230
    %v268 = vpack.c.b16 %v253, %v252
    %v269 = vpack.c.b16 %v255, %v254
    %v270 = vpack.c.b16 %v257, %v256
    %v271 = vpack.c.b16 %v259, %v258
    %v272 = vpack.c.b16 %v261, %v260
    %v273 = vpack.c.b16 %v263, %v262
    %v274 = vpack.c.b16 %v265, %v264
    %v275 = vpack.c.b16 %v267, %v266
    %284 = vmatpush.bf16.msra.mxu0 %v275
    %285 = vmatpush.bf16.msra.mxu0 %v274
    %286 = vmatpush.bf16.msra.mxu0 %v273
    %287 = vmatpush.bf16.msra.mxu0 %v272
    %288 = vmatpush.bf16.msra.mxu0 %v271
    %289 = vmatpush.bf16.msra.mxu0 %v270
    %290 = vmatpush.bf16.msra.mxu0 %v269
    %291 = vmatpush.bf16.msra.mxu0 %v268
    %292 = vmatmul.bf16.gmra.mxu0 %v213
    %v293 = vpop.f32.mrf.mxu0
    %v294 = vadd.f32 %v234, %v293
    %v295 = vpop.f32.mrf.mxu0
    %v296 = vadd.f32 %v234, %v295
    %297 = vdwg.mxu0
    %v298 = vmax.f32 %v294, 0.0
    %v299 = vmax.f32 %v296, 0.0
    %v300 = vpack.c.bf16 %v299, %v298
    %s301 = scalar_lea.vmem [#allocation7], 128
    %v302 = vld [vmem:[%s301] sm:$0xf]
    %v303 = vld [vmem:[%s301 + $0x4] sm:$0xf]
    %v304 = vld [vmem:[%s301 + $0x8] sm:$0xf]
    %v305 = vld [vmem:[%s301 + $0xc] sm:$0xf]
    %v306 = vld [vmem:[%s301 + $0x10] sm:$0xf]
    %v307 = vld [vmem:[%s301 + $0x14] sm:$0xf]
    %v308 = vld [vmem:[%s301 + $0x18] sm:$0xf]
    %v309 = vld [vmem:[%s301 + $0x1c] sm:$0xf]
    %v310 = vld [vmem:[%s301 + $0x20] sm:$0xf]
    %v311 = vld [vmem:[%s301 + $0x24] sm:$0xf]
    %v312 = vld [vmem:[%s301 + $0x28] sm:$0xf]
    %v313 = vld [vmem:[%s301 + $0x2c] sm:$0xf]
    %v314 = vld [vmem:[%s301 + $0x30] sm:$0xf]
    %v315 = vld [vmem:[%s301 + $0x34] sm:$0xf]
    %v316 = vld [vmem:[%s301 + $0x38] sm:$0xf]
    %v317 = vld [vmem:[%s301 + $0x3c] sm:$0xf]
    %s318 = scalar_lea.vmem [#allocation8], 3
    %v319 = vld [vmem:[%s318] sm:$0x1]
    %v321 = vperm.slane %v319, 0
    %v339 = vunpack.c.l.b16 %v302
    %v340 = vunpack.c.l.b16 %v303
    %v341 = vunpack.c.l.b16 %v304
    %v342 = vunpack.c.l.b16 %v305
    %v343 = vunpack.c.l.b16 %v306
    %v344 = vunpack.c.l.b16 %v307
    %v345 = vunpack.c.l.b16 %v308
    %v346 = vunpack.c.l.b16 %v309
    %v347 = vunpack.c.l.b16 %v310
    %v348 = vunpack.c.l.b16 %v311
    %v349 = vunpack.c.l.b16 %v312
    %v350 = vunpack.c.l.b16 %v313
    %v351 = vunpack.c.l.b16 %v314
    %v352 = vunpack.c.l.b16 %v315
    %v353 = vunpack.c.l.b16 %v316
    %v354 = vunpack.c.l.b16 %v317
    %v355 = vpack.c.b16 %v340, %v339
    %v356 = vpack.c.b16 %v342, %v341
    %v357 = vpack.c.b16 %v344, %v343
    %v358 = vpack.c.b16 %v346, %v345
    %v359 = vpack.c.b16 %v348, %v347
    %v360 = vpack.c.b16 %v350, %v349
    %v361 = vpack.c.b16 %v352, %v351
    %v362 = vpack.c.b16 %v354, %v353
    %371 = vmatpush.bf16.msra.mxu0 %v362
    %372 = vmatpush.bf16.msra.mxu0 %v361
    %373 = vmatpush.bf16.msra.mxu0 %v360
    %374 = vmatpush.bf16.msra.mxu0 %v359
    %375 = vmatpush.bf16.msra.mxu0 %v358
    %376 = vmatpush.bf16.msra.mxu0 %v357
    %377 = vmatpush.bf16.msra.mxu0 %v356
    %378 = vmatpush.bf16.msra.mxu0 %v355
    %379 = vmatmul.bf16.gmra.mxu0 %v300
    %v380 = vpop.f32.mrf.mxu0
    %v381 = vadd.f32 %v321, %v380
    %v382 = vpop.f32.mrf.mxu0
    %v383 = vadd.f32 %v321, %v382
    %384 = vdwg.mxu0
    %v385 = vmax.f32 %v381, 0.0
    %v386 = vmax.f32 %v383, 0.0
    %v387 = vpack.c.bf16 %v386, %v385
    %s388 = scalar_lea.vmem [#allocation7], 192
    %v389 = vld [vmem:[%s388] sm:$0xf]
    %v390 = vld [vmem:[%s388 + $0x4] sm:$0xf]
    %v391 = vld [vmem:[%s388 + $0x8] sm:$0xf]
    %v392 = vld [vmem:[%s388 + $0xc] sm:$0xf]
    %v393 = vld [vmem:[%s388 + $0x10] sm:$0xf]
    %v394 = vld [vmem:[%s388 + $0x14] sm:$0xf]
    %v395 = vld [vmem:[%s388 + $0x18] sm:$0xf]
    %v396 = vld [vmem:[%s388 + $0x1c] sm:$0xf]
    %v397 = vld [vmem:[%s388 + $0x20] sm:$0xf]
    %v398 = vld [vmem:[%s388 + $0x24] sm:$0xf]
    %v399 = vld [vmem:[%s388 + $0x28] sm:$0xf]
    %v400 = vld [vmem:[%s388 + $0x2c] sm:$0xf]
    %v401 = vld [vmem:[%s388 + $0x30] sm:$0xf]
    %v402 = vld [vmem:[%s388 + $0x34] sm:$0xf]
    %v403 = vld [vmem:[%s388 + $0x38] sm:$0xf]
    %v404 = vld [vmem:[%s388 + $0x3c] sm:$0xf]
    %s405 = scalar_lea.vmem [#allocation8], 4
    %v406 = vld [vmem:[%s405] sm:$0x1]
    %v408 = vperm.slane %v406, 0
    %v426 = vunpack.c.l.b16 %v389
    %v427 = vunpack.c.l.b16 %v390
    %v428 = vunpack.c.l.b16 %v391
    %v429 = vunpack.c.l.b16 %v392
    %v430 = vunpack.c.l.b16 %v393
    %v431 = vunpack.c.l.b16 %v394
    %v432 = vunpack.c.l.b16 %v395
    %v433 = vunpack.c.l.b16 %v396
    %v434 = vunpack.c.l.b16 %v397
    %v435 = vunpack.c.l.b16 %v398
    %v436 = vunpack.c.l.b16 %v399
    %v437 = vunpack.c.l.b16 %v400
    %v438 = vunpack.c.l.b16 %v401
    %v439 = vunpack.c.l.b16 %v402
    %v440 = vunpack.c.l.b16 %v403
    %v441 = vunpack.c.l.b16 %v404
    %v442 = vpack.c.b16 %v427, %v426
    %v443 = vpack.c.b16 %v429, %v428
    %v444 = vpack.c.b16 %v431, %v430
    %v445 = vpack.c.b16 %v433, %v432
    %v446 = vpack.c.b16 %v435, %v434
    %v447 = vpack.c.b16 %v437, %v436
    %v448 = vpack.c.b16 %v439, %v438
    %v449 = vpack.c.b16 %v441, %v440
    %458 = vmatpush.bf16.msra.mxu0 %v449
    %459 = vmatpush.bf16.msra.mxu0 %v448
    %460 = vmatpush.bf16.msra.mxu0 %v447
    %461 = vmatpush.bf16.msra.mxu0 %v446
    %462 = vmatpush.bf16.msra.mxu0 %v445
    %463 = vmatpush.bf16.msra.mxu0 %v444
    %464 = vmatpush.bf16.msra.mxu0 %v443
    %465 = vmatpush.bf16.msra.mxu0 %v442
    %466 = vmatmul.bf16.gmra.mxu0 %v387
    %v467 = vpop.f32.mrf.mxu0
    %v468 = vadd.f32 %v408, %v467
    %v469 = vpop.f32.mrf.mxu0
    %v470 = vadd.f32 %v408, %v469
    %471 = vdwg.mxu0
    %v472 = vpack.c.bf16 %v468, %v468
    %v473 = vpack.c.bf16 %v470, %v470
    %474 = vst [vmem:[#allocation10] sm:$0xf] %v472
    %475 = vst [vmem:[#allocation10 + $0x4] sm:$0xf] %v473
    // Predicated region
    $region34: #{tpu_custom_call.1} parent=1 // pred_check
      _
    $region35: #{tpu_custom_call.1} parent=1 // pred_check_branch
      %477 = sbr.rel (0) target = $region37
    $region36: #{tpu_custom_call.1} parent=1 // pred_region
      %479 = vsyncadd [#allocation4], 0
      %s480 = sshll.u32 [#allocation10], 4
      %s481 = int_to_ptr.vmem [resolvable:$true] %s480
      %s482 = sshll.u32 %s4, 4
      %s483 = int_to_ptr.hbm [resolvable:$true] %s482
      %488 = dma.vmem_to_hbm [thread:$0]  %s481, 128, %s483, [#allocation4], 64, 64, 4
    $region37: #{tpu_custom_call.1} parent=1 // pred_fallthru
      _
    // Predicated region
    $region38: #{tpu_custom_call.1} parent=1 // pred_check
      _
    $region39: #{tpu_custom_call.1} parent=1 // pred_check_branch
      %490 = sbr.rel (0) target = $region41
    $region40: #{tpu_custom_call.1} parent=1 // pred_region
      %492 = dma.done [#allocation4], 128
    $region41: #{tpu_custom_call.1} parent=1 // pred_fallthru
      _
    %493 = vsyncpa [#allocation3], 1
    %494 = vsyncpa [#allocation6], 1
    %495 = vsyncpa [#allocation9], 1
    %496 = vsyncpa [#allocation4], 1

</llo_original>
